<compile_context>
chip_gen: v7x
topology: tpu7x:2x2x1
jax: 0.10.0
libtpu: 0.0.40
codegen_flags: <defaults>
</compile_context>

<pallas_src>
import functools

import jax
import jax.numpy as jnp
import numpy as np
from jax import lax
from jax.experimental import pallas as pl
from jax.experimental.pallas import tpu as pltpu


def _round_up(v, m):
    return ((v + m - 1) // m) * m


def _pick_pack(batch, c_in, itemsize):
    """Samples packed per grid step.

    Priorities: (1) keep >=2 batch groups so the 'parallel' axis splits across
    the v7x megacore, (2) fill the dtype-dependent sublane pack, (3) larger T
    to amortize per-step overhead.
    """
    if batch <= 1:
        return 1
    sub = max(8, 32 // max(1, int(itemsize)))      # f32 -> 8, bf16 -> 16, i8 -> 32
    best_t, best_key = 1, None
    for t in (1, 2, 4, 8):
        if t > batch or batch % t:
            continue
        bg = batch // t
        key = (bg >= 2, (t * c_in) % sub == 0, t)
        if best_key is None or key > best_key:
            best_t, best_key = t, key
    # TODO(synk): for batches with no aligned divisor we fall back to a smaller
    # T instead of padding B with dummy samples (padding would cost a full
    # extra HBM read+write of both inputs for this bandwidth-bound op).
    return best_t


def _choose_tile(n_pixels, tc, tk, ta, x_bytes, s_bytes, mm_bytes):
    """Pixel-tile lane width + vmem_limit sized from the VMEM budget."""
    try:
        info = pltpu.get_tpu_info()
        vmem_cap = int(getattr(info, "vmem_capacity_bytes", 0)) or (64 << 20)
    except Exception:
        vmem_cap = 64 << 20                        # conservative (v7x per-core)
    budget = min(int(vmem_cap * 0.6), 96 << 20)    # ~40 MiB v7x, ~77 MiB v5e/v6e

    # Per-lane VMEM bytes: double-buffered input blocks + the concatenated A
    # tile + one set of cast/shift temporaries.
    per_lane = (2 * (tc * x_bytes + tk * s_bytes)
                + ta * mm_bytes + (tc + tk) * mm_bytes)
    tn = max(512, min(budget // per_lane, 32768))
    tn = (tn // 128) * 128
    tn = min(tn, _round_up(n_pixels, 128))
    # Prefer a tile width that divides N exactly (skips the ragged-tile mask).
    if n_pixels % tn:
        for cand in range(tn, max(128, tn - 8 * 128) - 1, -128):
            if n_pixels % cand == 0:
                tn = cand
                break

    used = (2 * (tc * x_bytes + tk * s_bytes) * tn   # double-buffered inputs
            + ta * tn * mm_bytes                     # in-kernel concat A
            + (tc + tk) * tn * mm_bytes              # cast / shift temporaries
            + (ta * ta + tc) * 4 + (1 << 16))        # scratch + slack
    limit = int(used * 1.3) + (8 << 20)
    limit = max(limit, 32 << 20)
    limit = min(limit, max(vmem_cap - (4 << 20), 32 << 20), 100 << 20)
    return tn, limit


def _ev_kernel(x_ref, s_ref, ssr_ref, sst_ref, gacc, c_ref, *,
               eps, c_in, k, t_pack, n_pixels, tile_n, m_total,
               needs_mask, use_shift, mm_dtype):
    """grid = (batch groups, pixel tiles).

    x_ref : (T*C_in, TN) input tile (native dtype)
    s_ref : (T*K,    TN) soft-assignment tile (native dtype)
    gacc  : (TA, TA) f32 augmented-Gram accumulator, TA = T*C_in + T*K + 1
    c_ref : (T*C_in, 1) f32 per-channel shift (f32 inputs only)
    """
    n = pl.program_id(1)
    nt = pl.num_programs(1)
    tc = t_pack * c_in
    ta = tc + t_pack * k + 1

    x_t = x_ref[...]
    s_t = s_ref[...]

    if needs_mask:
        rem = n_pixels - n * tile_n
        lane = lax.broadcasted_iota(jnp.int32, (1, tile_n), 1)
        valid = lane < rem
        x_t = jnp.where(valid, x_t, 0)
        s_t = jnp.where(valid, s_t, 0)
        ones_row = valid.astype(mm_dtype)
    else:
        ones_row = jnp.ones((1, tile_n), dtype=mm_dtype)

    @pl.when(n == 0)
    def _init():
        gacc[...] = jnp.zeros_like(gacc)
        if use_shift:
            # Per-channel shift estimated from the first pixel tile.  Any
            # constant works (the finalize algebra is exact); it only centers
            # the big accumulated terms to tame f32 cancellation.
            cnt = float(min(tile_n, n_pixels))
            c_ref[...] = jnp.sum(x_t.astype(jnp.float32), axis=1,
                                 keepdims=True) * (1.0 / cnt)

    if use_shift:
        xa = x_t.astype(jnp.float32) - c_ref[...]
        if needs_mask:
            xa = jnp.where(valid, xa, 0.0)   # re-zero lanes the shift un-zeroed
        sa = s_t.astype(jnp.float32)
    else:
        xa = x_t.astype(mm_dtype)
        sa = s_t.astype(mm_dtype)

    # One augmented Gram per step: all needed reductions in a single MXU pass.
    a = jnp.concatenate([xa, sa, ones_row], axis=0)          # (TA, TN)
    gacc[...] += lax.dot_general(
        a, a, dimension_numbers=(((1,), (1,)), ((), ())),
        preferred_element_type=jnp.float32)

    @pl.when(n == nt - 1)
    def _finalize():
        g = gacc[...]
        lane_t = lax.broadcasted_iota(jnp.int32, (1, t_pack), 1)
        ssr_row = jnp.zeros((1, t_pack), jnp.float32)
        sst_row = jnp.zeros((1, t_pack), jnp.float32)
        inv_m = 1.0 / float(m_total)
        n_pix = float(n_pixels)
        row_i = lax.broadcasted_iota(jnp.int32, (c_in, c_in), 0)
        col_i = lax.broadcasted_iota(jnp.int32, (c_in, c_in), 1)
        eye_m = row_i == col_i

        for t in range(t_pack):            # static, tiny per-sample work
            r0, r1 = t * c_in, (t + 1) * c_in
            c0, c1 = tc + t * k, tc + (t + 1) * k

            yy = g[r0:r1, r0:r1]                   # y y^T          (C, C)
            gy = g[r0:r1, c0:c1]                   # y s^T          (C, K)
            gs = g[c0:c1, c0:c1]                   # s s^T          (K, K)
            cnt_row = g[ta - 1:ta, c0:c1]          # cluster counts (1, K)
            ysum = g[r0:r1, ta - 1:ta]             # per-channel sum (C, 1)

            y2 = jnp.sum(jnp.where(eye_m, yy, 0.0))          # sum(y^2)
            denom = cnt_row + eps
            means_y = gy / denom                              # (C, K)
            mg = jnp.dot(means_y, gs, preferred_element_type=jnp.float32)
            a_term = y2 - 2.0 * jnp.sum(means_y * gy) + jnp.sum(mg * means_y)

            if use_shift:
                # Exact un-shift: x = y + c, means = means_y + c*w.
                cvec = c_ref[r0:r1, :]                        # (C, 1)
                w_row = cnt_row / denom                       # (1, K)
                cnt_col = g[c0:c1, ta - 1:ta]                 # (K, 1)
                w_col = cnt_col / (cnt_col + eps)             # (K, 1)
                b_col = (ysum
                         - jnp.sum(means_y * cnt_row, axis=1, keepdims=True)
                         - jnp.sum(gy * w_row, axis=1, keepdims=True)
                         + jnp.sum(mg * w_row, axis=1, keepdims=True))
                wc = jnp.sum(w_row * cnt_row)
                wgw = jnp.sum(gs * w_col * w_row)
                d_term = n_pix - 2.0 * wc + wgw
                ssr_t = (a_term + 2.0 * jnp.sum(cvec * b_col)
                         + jnp.sum(cvec * cvec) * d_term)

                y_tot = jnp.sum(ysum)
                gm = (y_tot + n_pix * jnp.sum(cvec)) * inv_m
                e = cvec - gm
                sst_t = y2 + 2.0 * jnp.sum(e * ysum) + n_pix * jnp.sum(e * e)
            else:
                x_tot = jnp.sum(ysum)
                ssr_t = a_term
                sst_t = y2 - x_tot * x_tot * inv_m

            ssr_row = jnp.where(lane_t == t, ssr_t, ssr_row)
            sst_row = jnp.where(lane_t == t, sst_t, sst_row)

        ssr_ref[...] = ssr_row
        sst_ref[...] = sst_row


def explained_variation_loss(x, soft_assignments, eps=1e-8):
    """Matches ExplainedVariationLoss.forward.

    x:                (B, C_in, H, W)
    soft_assignments: (B, K,    H, W)
    Returns (loss scalar, ev_per_sample (B,)).
    """
    B, C_in, H, W = x.shape
    Bs, K, Hs, Ws = soft_assignments.shape
    assert (B, H, W) == (Bs, Hs, Ws), "x / soft_assignments shape mismatch"
    N = H * W
    M = C_in * N

    x_bytes = x.dtype.itemsize
    s_bytes = soft_assignments.dtype.itemsize
    mm_dtype = jnp.promote_types(x.dtype, soft_assignments.dtype)
    if mm_dtype.name not in ("bfloat16", "float16"):
        mm_dtype = np.dtype("float32")
    use_shift = mm_dtype.name == "float32"

    T = _pick_pack(B, C_in, min(x_bytes, s_bytes))
    BG = B // T
    TC, TK = T * C_in, T * K
    TA = TC + TK + 1

    TN, vmem_limit = _choose_tile(N, TC, TK, TA, x_bytes, s_bytes,
                                  np.dtype(mm_dtype).itemsize)
    NT = pl.cdiv(N, TN)
    needs_mask = (N % TN) != 0

    # Contiguous packing of T samples per batch group: pure reshape, no copy.
    x_r = x.reshape(BG, TC, N)
    s_r = soft_assignments.reshape(BG, TK, N)

    kernel = functools.partial(
        _ev_kernel, eps=float(eps), c_in=C_in, k=K, t_pack=T, n_pixels=N,
        tile_n=TN, m_total=M, needs_mask=needs_mask, use_shift=use_shift,
        mm_dtype=mm_dtype)

    ssr, sst = pl.pallas_call(
        kernel,
        out_shape=(jax.ShapeDtypeStruct((BG, 1, T), jnp.float32),
                   jax.ShapeDtypeStruct((BG, 1, T), jnp.float32)),
        grid_spec=pltpu.PrefetchScalarGridSpec(
            num_scalar_prefetch=0,
            grid=(BG, NT),
            in_specs=[
                pl.BlockSpec((None, TC, TN), lambda b, n: (b, 0, n)),
                # TODO(synk): sweep pipeline_mode=pl.Buffered(3) on this input
                # on v5e only if xprof shows exposed DMA waits.
                pl.BlockSpec((None, TK, TN), lambda b, n: (b, 0, n)),
            ],
            out_specs=(
                pl.BlockSpec((None, 1, T), lambda b, n: (b, 0, 0)),
                pl.BlockSpec((None, 1, T), lambda b, n: (b, 0, 0)),
            ),
            scratch_shapes=[
                pltpu.VMEM((TA, TA), jnp.float32),  # augmented Gram accumulator
                pltpu.VMEM((TC, 1), jnp.float32),   # per-channel shift c
            ],
        ),
        compiler_params=pltpu.CompilerParams(
            # Batch groups shard across the 2 v7x TensorCores; pixel tiles are
            # a sequential reduction into the resident accumulators.
            dimension_semantics=("parallel", "arbitrary"),
            vmem_limit_bytes=int(vmem_limit),
        ),
    )(x_r, s_r)

    ssr = ssr.reshape(B)
    sst = sst.reshape(B)
    sst_total = jnp.sum(sst) + eps          # SST_per_sample.sum() + eps
    loss = jnp.sum(ssr) / sst_total
    ev_per_sample = 1.0 - ssr / (sst + eps)
    return loss, ev_per_sample


def _reference(x, s, eps=1e-8):
    """Pure-JAX reference mirroring the PyTorch module, for verification."""
    counts = s.sum(axis=(2, 3))                                   # (B, K)
    sums = (x[:, :, None] * s[:, None]).sum(axis=(3, 4))          # (B, C_in, K)
    means = sums / (counts[:, None] + eps)                        # (B, C_in, K)
    recon = jnp.einsum('bmk,bkhw->bmhw', means, s,
                       precision=jax.lax.Precision.HIGHEST)       # (B, C_in, H, W)
    gmean = x.mean(axis=(1, 2, 3), keepdims=True)
    sst = ((x - gmean) ** 2).sum(axis=(1, 2, 3))
    ssr = ((x - recon) ** 2).sum(axis=(1, 2, 3))
    loss = ssr.sum() / (sst.sum() + eps)
    ev = 1.0 - ssr / (sst + eps)
    return loss, ev


if __name__ == "__main__":
    B, C_in, H, W = 2, 4, 16, 16
    num_clusters = 8

    key = jax.random.PRNGKey(0)
    kx, ks = jax.random.split(key)
    x = jax.random.normal(kx, (B, C_in, H, W), dtype=jnp.float32)
    logits = jax.random.normal(ks, (B, num_clusters, H, W), dtype=jnp.float32)
    soft_assignments = jax.nn.softmax(logits, axis=1)             # soft cluster probs

    loss, ev = explained_variation_loss(x, soft_assignments, eps=1e-8)
    loss = jax.block_until_ready(loss)
    ev = jax.block_until_ready(ev)

    ref_loss, ref_ev = _reference(x, soft_assignments, eps=1e-8)
    assert np.allclose(np.asarray(loss), np.asarray(ref_loss),
                       rtol=1e-4, atol=1e-5), (loss, ref_loss)
    assert np.allclose(np.asarray(ev), np.asarray(ref_ev),
                       rtol=1e-4, atol=1e-5), (ev, ref_ev)

    print("KERNEL_OK")
</pallas_src>

<mosaic_0001>
module attributes {stable_mosaic.version = 11 : i64} {
  func.func @_ev_kernel(%arg0: i32, %arg1: i32, %arg2: memref<1x4x256xf32, #tpu.memory_space<vmem>>, %arg3: memref<1x8x256xf32, #tpu.memory_space<vmem>>, %arg4: memref<1x1x1xf32, #tpu.memory_space<vmem>>, %arg5: memref<1x1x1xf32, #tpu.memory_space<vmem>>, %arg6: memref<13x13xf32, #tpu.memory_space<vmem>>, %arg7: memref<4x1xf32, #tpu.memory_space<vmem>>) attributes {dimension_semantics = [#tpu.dimension_semantics<parallel>, #tpu.dimension_semantics<arbitrary>], iteration_bounds = array<i64: 2, 1>, scalar_prefetch = 0 : i64, scratch_operands = 2 : i64, tpu.core_type = #tpu.core_type<tc>, window_params = [{transform_indices = @transform_0, window_bounds = array<i64: 1, 4, 256>}, {transform_indices = @transform_1, window_bounds = array<i64: 1, 8, 256>}, {transform_indices = @transform_2, window_bounds = array<i64: 1, 1, 1>}, {transform_indices = @transform_3, window_bounds = array<i64: 1, 1, 1>}]} {
    %c0 = arith.constant 0 : index
    %c0_0 = arith.constant 0 : index
    %c0_1 = arith.constant 0 : index
    %0 = vector.load %arg2[%c0, %c0_0, %c0_1] : memref<1x4x256xf32, #tpu.memory_space<vmem>>, vector<1x4x256xf32>
    %1 = vector.shape_cast %0 : vector<1x4x256xf32> to vector<4x256xf32>
    %c0_2 = arith.constant 0 : index
    %c0_3 = arith.constant 0 : index
    %c0_4 = arith.constant 0 : index
    %2 = vector.load %arg3[%c0_2, %c0_3, %c0_4] : memref<1x8x256xf32, #tpu.memory_space<vmem>>, vector<1x8x256xf32>
    %3 = vector.shape_cast %2 : vector<1x8x256xf32> to vector<8x256xf32>
    %cst = arith.constant 1.000000e+00 : f32
    %4 = vector.broadcast %cst : f32 to vector<1x256xf32>
    %c0_i32 = arith.constant 0 : i32
    %5 = arith.cmpi eq, %arg1, %c0_i32 : i32
    %6 = arith.extui %5 : i1 to i32
    %c0_i32_5 = arith.constant 0 : i32
    %7 = arith.cmpi ne, %6, %c0_i32_5 : i32
    scf.if %7 {
      %cst_15 = arith.constant 0.000000e+00 : f32
      %19 = vector.broadcast %cst_15 : f32 to vector<13x13xf32>
      %c0_16 = arith.constant 0 : index
      %c0_17 = arith.constant 0 : index
      %20 = vector.load %arg6[%c0_16, %c0_17] : memref<13x13xf32, #tpu.memory_space<vmem>>, vector<13x13xf32>
      tpu.vector_store %arg6[%c0_16, %c0_17], %19 {strides = array<i32>} : memref<13x13xf32, #tpu.memory_space<vmem>>, vector<13x13xf32>,
      %cst_18 = arith.constant dense<0.000000e+00> : vector<4xf32>
      %21 = vector.multi_reduction <add>, %1, %cst_18 [1] : vector<4x256xf32> to vector<4xf32>
      %22 = vector.shape_cast %21 : vector<4xf32> to vector<4x1xf32>
      %cst_19 = arith.constant 3.906250e-03 : f32
      %23 = vector.broadcast %cst_19 : f32 to vector<4x1xf32>
      %24 = arith.mulf %22, %23 : vector<4x1xf32>
      %c0_20 = arith.constant 0 : index
      %c0_21 = arith.constant 0 : index
      %25 = vector.load %arg7[%c0_20, %c0_21] : memref<4x1xf32, #tpu.memory_space<vmem>>, vector<4x1xf32>
      tpu.vector_store %arg7[%c0_20, %c0_21], %24 {strides = array<i32>} : memref<4x1xf32, #tpu.memory_space<vmem>>, vector<4x1xf32>,
    } else {
    }
    %c0_6 = arith.constant 0 : index
    %c0_7 = arith.constant 0 : index
    %8 = vector.load %arg7[%c0_6, %c0_7] : memref<4x1xf32, #tpu.memory_space<vmem>>, vector<4x1xf32>
    %9 = vector.broadcast %8 : vector<4x1xf32> to vector<4x256xf32>
    %10 = arith.subf %1, %9 : vector<4x256xf32>
    %11 = tpu.concatenate %10, %3, %4 in 0 : vector<4x256xf32>, vector<8x256xf32>, vector<1x256xf32> -> vector<13x256xf32>
    %c0_8 = arith.constant 0 : index
    %c0_9 = arith.constant 0 : index
    %12 = vector.load %arg6[%c0_8, %c0_9] : memref<13x13xf32, #tpu.memory_space<vmem>>, vector<13x13xf32>
    %cst_10 = arith.constant dense<0.000000e+00> : vector<13x13xf32>
    %13 = tpu.matmul %11, %11, %cst_10 {dimension_numbers = #tpu.dot_dimension_numbers<[1], [1], [0], [0], [0, 0, 1, 0], [], []>} : vector<13x256xf32>, vector<13x256xf32>, vector<13x13xf32> -> vector<13x13xf32>
    %14 = arith.addf %12, %13 : vector<13x13xf32>
    %c0_11 = arith.constant 0 : index
    %c0_12 = arith.constant 0 : index
    %15 = vector.load %arg6[%c0_11, %c0_12] : memref<13x13xf32, #tpu.memory_space<vmem>>, vector<13x13xf32>
    tpu.vector_store %arg6[%c0_11, %c0_12], %14 {strides = array<i32>} : memref<13x13xf32, #tpu.memory_space<vmem>>, vector<13x13xf32>,
    %c0_i32_13 = arith.constant 0 : i32
    %16 = arith.cmpi eq, %arg1, %c0_i32_13 : i32
    %17 = arith.extui %16 : i1 to i32
    %c0_i32_14 = arith.constant 0 : i32
    %18 = arith.cmpi ne, %17, %c0_i32_14 : i32
    scf.if %18 {
      %c0_15 = arith.constant 0 : index
      %c0_16 = arith.constant 0 : index
      %19 = vector.load %arg6[%c0_15, %c0_16] : memref<13x13xf32, #tpu.memory_space<vmem>>, vector<13x13xf32>
      %20 = tpu.iota {dimensions = array<i32: 1>} : vector<1x1xi32>
      %cst_17 = arith.constant 0.000000e+00 : f32
      %21 = vector.broadcast %cst_17 : f32 to vector<1x1xf32>
      %cst_18 = arith.constant 0.000000e+00 : f32
      %22 = vector.broadcast %cst_18 : f32 to vector<1x1xf32>
      %23 = tpu.iota {dimensions = array<i32: 0>} : vector<4x4xi32>
      %24 = tpu.iota {dimensions = array<i32: 1>} : vector<4x4xi32>
      %25 = arith.cmpi eq, %23, %24 : vector<4x4xi32>
      %26 = vector.extract_strided_slice %19 {offsets = [0, 0], sizes = [4, 4], strides = [1, 1]} : vector<13x13xf32> to vector<4x4xf32>
      %27 = vector.extract_strided_slice %19 {offsets = [0, 4], sizes = [4, 8], strides = [1, 1]} : vector<13x13xf32> to vector<4x8xf32>
      %28 = vector.extract_strided_slice %19 {offsets = [4, 4], sizes = [8, 8], strides = [1, 1]} : vector<13x13xf32> to vector<8x8xf32>
      %29 = vector.extract_strided_slice %19 {offsets = [12, 4], sizes = [1, 8], strides = [1, 1]} : vector<13x13xf32> to vector<1x8xf32>
      %30 = vector.extract_strided_slice %19 {offsets = [0, 12], sizes = [4, 1], strides = [1, 1]} : vector<13x13xf32> to vector<4x1xf32>
      %cst_19 = arith.constant 0.000000e+00 : f32
      %31 = vector.broadcast %cst_19 : f32 to vector<4x4xf32>
      %32 = arith.select %25, %26, %31 : vector<4x4xi1>, vector<4x4xf32>
      %33 = vector.shape_cast %32 : vector<4x4xf32> to vector<1x4x4xf32>
      %cst_20 = arith.constant dense<0.000000e+00> : vector<1xf32>
      %34 = vector.multi_reduction <add>, %33, %cst_20 [1, 2] : vector<1x4x4xf32> to vector<1xf32>
      %35 = vector.shape_cast %34 : vector<1xf32> to vector<1x1x1xf32>
      %36 = vector.extract %35[0, 0, 0] : f32 from vector<1x1x1xf32>
      %cst_21 = arith.constant 9.99999993E-9 : f32
      %37 = vector.broadcast %cst_21 : f32 to vector<1x8xf32>
      %38 = arith.addf %29, %37 : vector<1x8xf32>
      %39 = vector.broadcast %38 : vector<1x8xf32> to vector<4x8xf32>
      %40 = arith.divf %27, %39 : vector<4x8xf32>
      %cst_22 = arith.constant dense<0.000000e+00> : vector<4x8xf32>
      %41 = tpu.matmul %40, %28, %cst_22 {dimension_numbers = #tpu.dot_dimension_numbers<[1], [0], [0], [1], [0, 0, 1, 1], [], []>} : vector<4x8xf32>, vector<8x8xf32>, vector<4x8xf32> -> vector<4x8xf32>
      %42 = arith.mulf %40, %27 : vector<4x8xf32>
      %43 = vector.shape_cast %42 : vector<4x8xf32> to vector<1x4x8xf32>
      %cst_23 = arith.constant dense<0.000000e+00> : vector<1xf32>
      %44 = vector.multi_reduction <add>, %43, %cst_23 [1, 2] : vector<1x4x8xf32> to vector<1xf32>
      %45 = vector.shape_cast %44 : vector<1xf32> to vector<1x1x1xf32>
      %46 = vector.extract %45[0, 0, 0] : f32 from vector<1x1x1xf32>
      %cst_24 = arith.constant 2.000000e+00 : f32
      %47 = arith.mulf %cst_24, %46 : f32
      %48 = arith.subf %36, %47 : f32
      %49 = arith.mulf %41, %40 : vector<4x8xf32>
      %50 = vector.shape_cast %49 : vector<4x8xf32> to vector<1x4x8xf32>
      %cst_25 = arith.constant dense<0.000000e+00> : vector<1xf32>
      %51 = vector.multi_reduction <add>, %50, %cst_25 [1, 2] : vector<1x4x8xf32> to vector<1xf32>
      %52 = vector.shape_cast %51 : vector<1xf32> to vector<1x1x1xf32>
      %53 = vector.extract %52[0, 0, 0] : f32 from vector<1x1x1xf32>
      %54 = arith.addf %48, %53 : f32
      %c0_26 = arith.constant 0 : index
      %c0_27 = arith.constant 0 : index
      %55 = vector.load %arg7[%c0_26, %c0_27] : memref<4x1xf32, #tpu.memory_space<vmem>>, vector<4x1xf32>
      %56 = arith.divf %29, %38 : vector<1x8xf32>
      %57 = vector.extract_strided_slice %19 {offsets = [4, 12], sizes = [8, 1], strides = [1, 1]} : vector<13x13xf32> to vector<8x1xf32>
      %cst_28 = arith.constant 9.99999993E-9 : f32
      %58 = vector.broadcast %cst_28 : f32 to vector<8x1xf32>
      %59 = arith.addf %57, %58 : vector<8x1xf32>
      %60 = arith.divf %57, %59 : vector<8x1xf32>
      %61 = vector.broadcast %29 : vector<1x8xf32> to vector<4x8xf32>
      %62 = arith.mulf %40, %61 : vector<4x8xf32>
      %cst_29 = arith.constant dense<0.000000e+00> : vector<4xf32>
      %63 = vector.multi_reduction <add>, %62, %cst_29 [1] : vector<4x8xf32> to vector<4xf32>
      %64 = vector.shape_cast %63 : vector<4xf32> to vector<4x1xf32>
      %65 = arith.subf %30, %64 : vector<4x1xf32>
      %66 = vector.broadcast %56 : vector<1x8xf32> to vector<4x8xf32>
      %67 = arith.mulf %27, %66 : vector<4x8xf32>
      %cst_30 = arith.constant dense<0.000000e+00> : vector<4xf32>
      %68 = vector.multi_reduction <add>, %67, %cst_30 [1] : vector<4x8xf32> to vector<4xf32>
      %69 = vector.shape_cast %68 : vector<4xf32> to vector<4x1xf32>
      %70 = arith.subf %65, %69 : vector<4x1xf32>
      %71 = vector.broadcast %56 : vector<1x8xf32> to vector<4x8xf32>
      %72 = arith.mulf %41, %71 : vector<4x8xf32>
      %cst_31 = arith.constant dense<0.000000e+00> : vector<4xf32>
      %73 = vector.multi_reduction <add>, %72, %cst_31 [1] : vector<4x8xf32> to vector<4xf32>
      %74 = vector.shape_cast %73 : vector<4xf32> to vector<4x1xf32>
      %75 = arith.addf %70, %74 : vector<4x1xf32>
      %76 = arith.mulf %56, %29 : vector<1x8xf32>
      %77 = vector.shape_cast %76 : vector<1x8xf32> to vector<1x1x8xf32>
      %cst_32 = arith.constant dense<0.000000e+00> : vector<1xf32>
      %78 = vector.multi_reduction <add>, %77, %cst_32 [1, 2] : vector<1x1x8xf32> to vector<1xf32>
      %79 = vector.shape_cast %78 : vector<1xf32> to vector<1x1x1xf32>
      %80 = vector.extract %79[0, 0, 0] : f32 from vector<1x1x1xf32>
      %81 = vector.broadcast %60 : vector<8x1xf32> to vector<8x8xf32>
      %82 = arith.mulf %28, %81 : vector<8x8xf32>
      %83 = vector.broadcast %56 : vector<1x8xf32> to vector<8x8xf32>
      %84 = arith.mulf %82, %83 : vector<8x8xf32>
      %85 = vector.shape_cast %84 : vector<8x8xf32> to vector<1x8x8xf32>
      %cst_33 = arith.constant dense<0.000000e+00> : vector<1xf32>
      %86 = vector.multi_reduction <add>, %85, %cst_33 [1, 2] : vector<1x8x8xf32> to vector<1xf32>
      %87 = vector.shape_cast %86 : vector<1xf32> to vector<1x1x1xf32>
      %88 = vector.extract %87[0, 0, 0] : f32 from vector<1x1x1xf32>
      %cst_34 = arith.constant 2.000000e+00 : f32
      %89 = arith.mulf %cst_34, %80 : f32
      %cst_35 = arith.constant 2.560000e+02 : f32
      %90 = arith.subf %cst_35, %89 : f32
      %91 = arith.addf %90, %88 : f32
      %92 = arith.mulf %55, %75 : vector<4x1xf32>
      %93 = vector.shape_cast %92 : vector<4x1xf32> to vector<1x4x1xf32>
      %cst_36 = arith.constant dense<0.000000e+00> : vector<1xf32>
      %94 = vector.multi_reduction <add>, %93, %cst_36 [1, 2] : vector<1x4x1xf32> to vector<1xf32>
      %95 = vector.shape_cast %94 : vector<1xf32> to vector<1x1x1xf32>
      %96 = vector.extract %95[0, 0, 0] : f32 from vector<1x1x1xf32>
      %cst_37 = arith.constant 2.000000e+00 : f32
      %97 = arith.mulf %cst_37, %96 : f32
      %98 = arith.addf %54, %97 : f32
      %99 = arith.mulf %55, %55 : vector<4x1xf32>
      %100 = vector.shape_cast %99 : vector<4x1xf32> to vector<1x4x1xf32>
      %cst_38 = arith.constant dense<0.000000e+00> : vector<1xf32>
      %101 = vector.multi_reduction <add>, %100, %cst_38 [1, 2] : vector<1x4x1xf32> to vector<1xf32>
      %102 = vector.shape_cast %101 : vector<1xf32> to vector<1x1x1xf32>
      %103 = vector.extract %102[0, 0, 0] : f32 from vector<1x1x1xf32>
      %104 = arith.mulf %103, %91 : f32
      %105 = arith.addf %98, %104 : f32
      %106 = vector.shape_cast %30 : vector<4x1xf32> to vector<1x4x1xf32>
      %cst_39 = arith.constant dense<0.000000e+00> : vector<1xf32>
      %107 = vector.multi_reduction <add>, %106, %cst_39 [1, 2] : vector<1x4x1xf32> to vector<1xf32>
      %108 = vector.shape_cast %107 : vector<1xf32> to vector<1x1x1xf32>
      %109 = vector.extract %108[0, 0, 0] : f32 from vector<1x1x1xf32>
      %110 = vector.shape_cast %55 : vector<4x1xf32> to vector<1x4x1xf32>
      %cst_40 = arith.constant dense<0.000000e+00> : vector<1xf32>
      %111 = vector.multi_reduction <add>, %110, %cst_40 [1, 2] : vector<1x4x1xf32> to vector<1xf32>
      %112 = vector.shape_cast %111 : vector<1xf32> to vector<1x1x1xf32>
      %113 = vector.extract %112[0, 0, 0] : f32 from vector<1x1x1xf32>
      %cst_41 = arith.constant 2.560000e+02 : f32
      %114 = arith.mulf %cst_41, %113 : f32
      %115 = arith.addf %109, %114 : f32
      %cst_42 = arith.constant 9.765625E-4 : f32
      %116 = arith.mulf %115, %cst_42 : f32
      %117 = vector.broadcast %116 : f32 to vector<4x1xf32>
      %118 = arith.subf %55, %117 : vector<4x1xf32>
      %119 = arith.mulf %118, %30 : vector<4x1xf32>
      %120 = vector.shape_cast %119 : vector<4x1xf32> to vector<1x4x1xf32>
      %cst_43 = arith.constant dense<0.000000e+00> : vector<1xf32>
      %121 = vector.multi_reduction <add>, %120, %cst_43 [1, 2] : vector<1x4x1xf32> to vector<1xf32>
      %122 = vector.shape_cast %121 : vector<1xf32> to vector<1x1x1xf32>
      %123 = vector.extract %122[0, 0, 0] : f32 from vector<1x1x1xf32>
      %cst_44 = arith.constant 2.000000e+00 : f32
      %124 = arith.mulf %cst_44, %123 : f32
      %125 = arith.addf %36, %124 : f32
      %126 = arith.mulf %118, %118 : vector<4x1xf32>
      %127 = vector.shape_cast %126 : vector<4x1xf32> to vector<1x4x1xf32>
      %cst_45 = arith.constant dense<0.000000e+00> : vector<1xf32>
      %128 = vector.multi_reduction <add>, %127, %cst_45 [1, 2] : vector<1x4x1xf32> to vector<1xf32>
      %129 = vector.shape_cast %128 : vector<1xf32> to vector<1x1x1xf32>
      %130 = vector.extract %129[0, 0, 0] : f32 from vector<1x1x1xf32>
      %cst_46 = arith.constant 2.560000e+02 : f32
      %131 = arith.mulf %cst_46, %130 : f32
      %132 = arith.addf %125, %131 : f32
      %c0_i32_47 = arith.constant 0 : i32
      %133 = vector.broadcast %c0_i32_47 : i32 to vector<1x1xi32>
      %134 = arith.cmpi eq, %20, %133 : vector<1x1xi32>
      %135 = vector.broadcast %105 : f32 to vector<1x1xf32>
      %136 = arith.select %134, %135, %21 : vector<1x1xi1>, vector<1x1xf32>
      %c0_i32_48 = arith.constant 0 : i32
      %137 = vector.broadcast %c0_i32_48 : i32 to vector<1x1xi32>
      %138 = arith.cmpi eq, %20, %137 : vector<1x1xi32>
      %139 = vector.broadcast %132 : f32 to vector<1x1xf32>
      %140 = arith.select %138, %139, %22 : vector<1x1xi1>, vector<1x1xf32>
      %c0_49 = arith.constant 0 : index
      %c0_50 = arith.constant 0 : index
      %c0_51 = arith.constant 0 : index
      %141 = vector.load %arg4[%c0_49, %c0_50, %c0_51] : memref<1x1x1xf32, #tpu.memory_space<vmem>>, vector<1x1x1xf32>
      %142 = vector.shape_cast %141 : vector<1x1x1xf32> to vector<1x1xf32>
      %143 = vector.shape_cast %136 : vector<1x1xf32> to vector<1x1x1xf32>
      tpu.vector_store %arg4[%c0_49, %c0_50, %c0_51], %143 {strides = array<i32>} : memref<1x1x1xf32, #tpu.memory_space<vmem>>, vector<1x1x1xf32>,
      %c0_52 = arith.constant 0 : index
      %c0_53 = arith.constant 0 : index
      %c0_54 = arith.constant 0 : index
      %144 = vector.load %arg5[%c0_52, %c0_53, %c0_54] : memref<1x1x1xf32, #tpu.memory_space<vmem>>, vector<1x1x1xf32>
      %145 = vector.shape_cast %144 : vector<1x1x1xf32> to vector<1x1xf32>
      %146 = vector.shape_cast %140 : vector<1x1xf32> to vector<1x1x1xf32>
      tpu.vector_store %arg5[%c0_52, %c0_53, %c0_54], %146 {strides = array<i32>} : memref<1x1x1xf32, #tpu.memory_space<vmem>>, vector<1x1x1xf32>,
    } else {
    }
    return
  }
  func.func @transform_0(%arg0: i32, %arg1: i32) -> (i32, i32, i32) {
    %c0_i32 = arith.constant 0 : i32
    %c0_i32_0 = arith.constant 0 : i32
    return %arg0, %c0_i32, %arg1 : i32, i32, i32
  }
  func.func @transform_1(%arg0: i32, %arg1: i32) -> (i32, i32, i32) {
    %c0_i32 = arith.constant 0 : i32
    %c0_i32_0 = arith.constant 0 : i32
    return %arg0, %c0_i32, %arg1 : i32, i32, i32
  }
  func.func @transform_2(%arg0: i32, %arg1: i32) -> (i32, i32, i32) {
    %c0_i32 = arith.constant 0 : i32
    %c0_i32_0 = arith.constant 0 : i32
    %c0_i32_1 = arith.constant 0 : i32
    return %arg0, %c0_i32, %c0_i32_0 : i32, i32, i32
  }
  func.func @transform_3(%arg0: i32, %arg1: i32) -> (i32, i32, i32) {
    %c0_i32 = arith.constant 0 : i32
    %c0_i32_0 = arith.constant 0 : i32
    %c0_i32_1 = arith.constant 0 : i32
    return %arg0, %c0_i32, %c0_i32_0 : i32, i32, i32
  }
}

</mosaic_0001>

<llo_original>
// kernel: tpu_custom_call.1
$region0: #{tpu_custom_call.1}
  #allocation0 [shape = 'u32[]', space=smem, size = 0x4, offset = 0x4, fixed_abs, tag = 'smem constant byte address 0x4 - core index']
  #allocation1 [shape = 'u32[144,128]{1,0:T(1,128)}', space=vmem, size = 0x12000, scoped, tag = 'internal scratch']
  #allocation2 [shape = 'f32[13,13]{1,0:T(8,128)}', space=vmem, size = 0x2000, scoped, tag = 'scratch operand']
  #allocation3 [shape = 'f32[4,1]{1,0:T(4,128)}', space=vmem, size = 0x800, scoped, tag = 'scratch operand']
  %s0 = inlined_call_operand.hbm [shape: f32[2,4,256], index: 0, kind: input, shape index: {}]
  %s1 = inlined_call_operand.hbm [shape: f32[2,8,256], index: 1, kind: input, shape index: {}]
  %s2 = inlined_call_operand.vmem [shape: f32[2,1,1], index: 2, kind: output, shape index: {0}]
  %s3 = inlined_call_operand.vmem [shape: f32[2,1,1], index: 3, kind: output, shape index: {1}]
  %4 = xla_tuple %s2, %s3
  %s5 = sld [smem:[#allocation0]]
  $region65: #{tpu_custom_call.1} parent=0
    _
  %s7 = ssub.s32 1, %s5
  %s8 = scalar_select 0, %s7, %s5
  $region1: #{tpu_custom_call.1} parent=0
    #allocation4 [shape = 'u8[8192]{0}', space=vmem, size = 0x2000, scoped, tag = 'input window, operand 0']
    #allocation5 [shape = 's32[2]{0}', space=sflag, size = 0x8, scoped, tag = 'scoped memory for tpu_custom_call.1']
    #allocation6 [shape = 'u8[16384]{0}', space=vmem, size = 0x4000, scoped, tag = 'input window, operand 1']
    #allocation7 [shape = 's32[2]{0}', space=sflag, size = 0x8, scoped, tag = 'scoped memory for tpu_custom_call.1']
    %9 = vsyncpa [#allocation5], 0
    %s10 = scalar_lea.sflag [#allocation5], 1
    %11 = vsyncpa %s10, 0
    %12 = vsyncpa [#allocation7], 0
    %s13 = scalar_lea.sflag [#allocation7], 1
    %14 = vsyncpa %s13, 0
    loop: start=0, step=1, limit=4
    $region2: #{tpu_custom_call.1} parent=1 // loop_pre_header
      _
    $region3: #{tpu_custom_call.1} parent=1 // loop_header
      %s16 = sphi 0, %s20
      %p17 = scmp.ge.s32.totalorder %s16, 4
      %s23 = sphi 0, %s35
      %s24 = sphi 0, %s31
      %s25 = sphi 0, %s23
      %s26 = sphi 0, %s24
      %s27 = sphi 0, %s25
      %s28 = sphi 0, %s26
      %s40 = sphi 0, %s42
      %s43 = sphi 0, %s40
      %s44 = sphi 0, %s43
      %s60 = sphi 0, %s44
      %s68 = sphi 0, %s70
      %s71 = sphi 0, %s68
      %s72 = sphi 0, %s71
      %s88 = sphi 0, %s72
      %s94 = sphi 0, %s96
      %s97 = sphi 0, %s94
      %s98 = sphi 0, %s97
      %s114 = sphi 0, %s98
      %s120 = sphi 0, %s122
      %s123 = sphi 0, %s120
      %s124 = sphi 0, %s123
      %s140 = sphi 0, %s124
    $region4: #{tpu_custom_call.1} parent=1 // loop_header_branch
      %19 = sbr.rel (%p17) target = $region8
    $region5: #{tpu_custom_call.1} parent=1 // loop_body
      %s21 = ssub.s32 %s16, 1
      %s22 = ssub.s32 %s16, 2
      %s29 = sadd.s32 1, %s24
      %p30 = scmp.ge.s32.totalorder %s29, 1
      %s31 = scalar_select %p30, 0, %s29
      %s32 = sadd.s32 1, %s23
      %s33 = scalar_select %p30, %s32, %s23
      %p34 = scmp.ge.s32.totalorder %s33, 2
      %s35 = scalar_select %p34, 0, %s33
      %s36 = ssub.s32 %s23, %s35
      %s37 = ssub.s32 %s24, %s31
      %s38 = sor.u32 %s36, %s37
      %p39 = scmp.eq.s32.totalorder %s38, 0
      %s41 = sadd.s32 %s40, 1
      %s42 = scalar_select %p39, %s40, %s41
      %p45 = pneg %p39
      %p46 = scmp.eq.s32.totalorder %s16, 1
      %p47 = por %p45, %p46
      %p48 = scmp.ne.s32.totalorder %s40, %s43
      %p49 = scmp.eq.s32.totalorder %s16, 0
      %p50 = por %p48, %p49
      %p51 = scmp.ne.s32.totalorder %s40, %s43
      %p52 = scmp.eq.s32.totalorder %s21, 1
      %p53 = por %p51, %p52
      %p54 = scmp.ne.s32.totalorder %s43, %s44
      %p55 = scmp.eq.s32.totalorder %s21, 0
      %p56 = por %p54, %p55
      %p57 = scmp.ne.s32.totalorder %s43, %s44
      %p58 = scmp.eq.s32.totalorder %s22, 1
      %p59 = por %p57, %p58
      %p61 = scmp.ne.s32.totalorder %s44, %s60
      %p62 = scmp.eq.s32.totalorder %s22, 0
      %p63 = por %p61, %p62
      %s64 = ssub.s32 %s23, %s35
      %s65 = ssub.s32 %s24, %s31
      %s66 = sor.u32 %s64, %s65
      %p67 = scmp.eq.s32.totalorder %s66, 0
      %s69 = sadd.s32 %s68, 1
      %s70 = scalar_select %p67, %s68, %s69
      %p73 = pneg %p67
      %p74 = scmp.eq.s32.totalorder %s16, 1
      %p75 = por %p73, %p74
      %p76 = scmp.ne.s32.totalorder %s68, %s71
      %p77 = scmp.eq.s32.totalorder %s16, 0
      %p78 = por %p76, %p77
      %p79 = scmp.ne.s32.totalorder %s68, %s71
      %p80 = scmp.eq.s32.totalorder %s21, 1
      %p81 = por %p79, %p80
      %p82 = scmp.ne.s32.totalorder %s71, %s72
      %p83 = scmp.eq.s32.totalorder %s21, 0
      %p84 = por %p82, %p83
      %p85 = scmp.ne.s32.totalorder %s71, %s72
      %p86 = scmp.eq.s32.totalorder %s22, 1
      %p87 = por %p85, %p86
      %p89 = scmp.ne.s32.totalorder %s72, %s88
      %p90 = scmp.eq.s32.totalorder %s22, 0
      %p91 = por %p89, %p90
      %s92 = ssub.s32 %s23, %s35
      %p93 = scmp.eq.s32.totalorder %s92, 0
      %s95 = sadd.s32 %s94, 1
      %s96 = scalar_select %p93, %s94, %s95
      %p99 = pneg %p93
      %p100 = scmp.eq.s32.totalorder %s16, 1
      %p101 = por %p99, %p100
      %p102 = scmp.ne.s32.totalorder %s94, %s97
      %p103 = scmp.eq.s32.totalorder %s16, 0
      %p104 = por %p102, %p103
      %p105 = scmp.ne.s32.totalorder %s94, %s97
      %p106 = scmp.eq.s32.totalorder %s21, 1
      %p107 = por %p105, %p106
      %p108 = scmp.ne.s32.totalorder %s97, %s98
      %p109 = scmp.eq.s32.totalorder %s21, 0
      %p110 = por %p108, %p109
      %p111 = scmp.ne.s32.totalorder %s97, %s98
      %p112 = scmp.eq.s32.totalorder %s22, 1
      %p113 = por %p111, %p112
      %p115 = scmp.ne.s32.totalorder %s98, %s114
      %p116 = scmp.eq.s32.totalorder %s22, 0
      %p117 = por %p115, %p116
      %s118 = ssub.s32 %s23, %s35
      %p119 = scmp.eq.s32.totalorder %s118, 0
      %s121 = sadd.s32 %s120, 1
      %s122 = scalar_select %p119, %s120, %s121
      %p125 = pneg %p119
      %p126 = scmp.eq.s32.totalorder %s16, 1
      %p127 = por %p125, %p126
      %p128 = scmp.ne.s32.totalorder %s120, %s123
      %p129 = scmp.eq.s32.totalorder %s16, 0
      %p130 = por %p128, %p129
      %p131 = scmp.ne.s32.totalorder %s120, %s123
      %p132 = scmp.eq.s32.totalorder %s21, 1
      %p133 = por %p131, %p132
      %p134 = scmp.ne.s32.totalorder %s123, %s124
      %p135 = scmp.eq.s32.totalorder %s21, 0
      %p136 = por %p134, %p135
      %p137 = scmp.ne.s32.totalorder %s123, %s124
      %p138 = scmp.eq.s32.totalorder %s22, 1
      %p139 = por %p137, %p138
      %p141 = scmp.ne.s32.totalorder %s124, %s140
      %p142 = scmp.eq.s32.totalorder %s22, 0
      %p143 = por %p141, %p142
      %p144 = scmp.le.s32.totalorder 1, %s16
      %p145 = scmp.lt.s32.totalorder %s16, 3
      %p146 = pnand %p144, %p145
      %p147 = pneg %p146
      // Predicated region
      $region9: #{tpu_custom_call.1} parent=5 // pred_check
        _
      $region10: #{tpu_custom_call.1} parent=5 // pred_check_branch
        %149 = sbr.rel (%p146) target = $region12
      $region11: #{tpu_custom_call.1} parent=5 // pred_region
        %s150 = ssub.s32 %s16, 1
      $region12: #{tpu_custom_call.1} parent=5 // pred_fallthru
        _
      %p151 = scmp.lt.s32.totalorder %s16, 2
      // Predicated region
      $region13: #{tpu_custom_call.1} parent=5 // pred_check
        %p152 = pneg %p151
      $region14: #{tpu_custom_call.1} parent=5 // pred_check_branch
        %154 = sbr.rel (%p152) target = $region16
      $region15: #{tpu_custom_call.1} parent=5 // pred_region
        // Predicated region
        $region17: #{tpu_custom_call.1} parent=15 // pred_check
          %p155 = pneg %p50
        $region18: #{tpu_custom_call.1} parent=15 // pred_check_branch
          %157 = sbr.rel (%p155) target = $region20
        $region19: #{tpu_custom_call.1} parent=15 // pred_region
          %s158 = sand.u32 %s40, 1
          %s159 = scalar_lea.sflag [#allocation5], %s158
          %s160 = sand.u32 %s40, 1
          %s161 = smul.addr %s160, 8
          %s162 = scalar_lea.vmem [#allocation4], %s161
          %s163 = smul.u32 2, %s24
          %s165 = ssub.s32 128, 128
          %166 = vsyncadd %s159, %s165
          %s167 = smul.addr %s23, 2
          %s168 = sadd.s32 %s163, %s167
          %s169 = smul.addr %s168, 64
          %s170 = scalar_lea.hbm %s0, %s169
          %s172 = sshll.u32 %s162, 4
          %s173 = int_to_ptr.vmem [resolvable:$true] %s172
          %175 = dma.hbm_to_vmem [thread:$0]  %s170, 128, %s173, %s159
        $region20: #{tpu_custom_call.1} parent=15 // pred_fallthru
          _
        // Predicated region
        $region21: #{tpu_custom_call.1} parent=15 // pred_check
          %p176 = pneg %p78
        $region22: #{tpu_custom_call.1} parent=15 // pred_check_branch
          %178 = sbr.rel (%p176) target = $region24
        $region23: #{tpu_custom_call.1} parent=15 // pred_region
          %s179 = sand.u32 %s68, 1
          %s180 = scalar_lea.sflag [#allocation7], %s179
          %s181 = sand.u32 %s68, 1
          %s182 = smul.addr %s181, 16
          %s183 = scalar_lea.vmem [#allocation6], %s182
          %s184 = smul.u32 2, %s24
          %s186 = ssub.s32 256, 256
          %187 = vsyncadd %s180, %s186
          %s188 = smul.addr %s23, 2
          %s189 = sadd.s32 %s184, %s188
          %s190 = smul.addr %s189, 128
          %s191 = scalar_lea.hbm %s1, %s190
          %s193 = sshll.u32 %s183, 4
          %s194 = int_to_ptr.vmem [resolvable:$true] %s193
          %196 = dma.hbm_to_vmem [thread:$0]  %s191, 256, %s194, %s180
        $region24: #{tpu_custom_call.1} parent=15 // pred_fallthru
          _
      $region16: #{tpu_custom_call.1} parent=5 // pred_fallthru
        _
      %p197 = scmp.le.s32.totalorder 1, %s16
      %p198 = scmp.lt.s32.totalorder %s16, 3
      %p199 = pnand %p197, %p198
      %p200 = pneg %p199
      // Predicated region
      $region25: #{tpu_custom_call.1} parent=5 // pred_check
        _
      $region26: #{tpu_custom_call.1} parent=5 // pred_check_branch
        %202 = sbr.rel (%p199) target = $region28
      $region27: #{tpu_custom_call.1} parent=5 // pred_region
        %s203 = ssub.s32 %s16, 1
        %s204 = sand.u32 %s43, 1
        %s205 = scalar_lea.sflag [#allocation5], %s204
        %s206 = sand.u32 %s43, 1
        %s207 = smul.addr %s206, 8
        %s208 = scalar_lea.vmem [#allocation4], %s207
        // Predicated region
        $region29: #{tpu_custom_call.1} parent=27 // pred_check
          %p209 = pneg %p56
        $region30: #{tpu_custom_call.1} parent=27 // pred_check_branch
          %211 = sbr.rel (%p209) target = $region32
        $region31: #{tpu_custom_call.1} parent=27 // pred_region
          %212 = dma.done %s205, 128
        $region32: #{tpu_custom_call.1} parent=27 // pred_fallthru
          _
        %s213 = sand.u32 %s71, 1
        %s214 = scalar_lea.sflag [#allocation7], %s213
        %s215 = sand.u32 %s71, 1
        %s216 = smul.addr %s215, 16
        %s217 = scalar_lea.vmem [#allocation6], %s216
        // Predicated region
        $region33: #{tpu_custom_call.1} parent=27 // pred_check
          %p218 = pneg %p84
        $region34: #{tpu_custom_call.1} parent=27 // pred_check_branch
          %220 = sbr.rel (%p218) target = $region36
        $region35: #{tpu_custom_call.1} parent=27 // pred_region
          %221 = dma.done %s214, 256
        $region36: #{tpu_custom_call.1} parent=27 // pred_fallthru
          _
        %s222 = sand.u32 %s43, 1
        %s223 = scalar_lea.sflag [#allocation5], %s222
        %s224 = sand.u32 %s43, 1
        %s225 = smul.addr %s224, 8
        %s226 = scalar_lea.vmem [#allocation4], %s225
        %p227 = pneg %p56
        %p228 = pneg %p53
        %s229 = sand.u32 %s71, 1
        %s230 = scalar_lea.sflag [#allocation7], %s229
        %s231 = sand.u32 %s71, 1
        %s232 = smul.addr %s231, 16
        %s233 = scalar_lea.vmem [#allocation6], %s232
        %p234 = pneg %p84
        %p235 = pneg %p81
        %p236 = pneg %p110
        %p237 = pneg %p107
        %p238 = scmp.lt.s32.totalorder %s25, 1
        %s239 = scalar_select %p238, %s25, 1
        %s240 = scalar_lea.vmem %s2, %s239
        %p241 = pneg %p136
        %p242 = pneg %p133
        %p243 = scmp.lt.s32.totalorder %s25, 1
        %s244 = scalar_select %p243, %s25, 1
        %s245 = scalar_lea.vmem %s3, %s244
        %s246 = smul.u32 2, %s26
        %s247 = smul.u32 2, %s26
        %p248 = scmp.lt.s32.totalorder %s25, 1
        %s249 = scalar_select %p248, %s25, 1
        %s250 = scalar_lea.vmem %s2, %s249
        %p251 = scmp.lt.s32.totalorder %s25, 1
        %s252 = scalar_select %p251, %s25, 1
        %s253 = scalar_lea.vmem %s3, %s252
        %v254 = vld [vmem:[%s208] sm:$0xff]
        %v255 = vld [vmem:[%s217] sm:$0xff]
        %v256 = vld [vmem:[%s217 + $0x8] sm:$0xff]
        %p257 = scmp.eq.s32.totalorder %s26, 0
        // Predicated region
        $region37: #{tpu_custom_call.1} parent=27 // pred_check
          %p258 = pneg %p257
        $region38: #{tpu_custom_call.1} parent=27 // pred_check_branch
          %260 = sbr.rel (%p258) target = $region40
        $region39: #{tpu_custom_call.1} parent=27 // pred_region
          %vm261 = vcmask 105472
          %262 = vst.msk [vmem:[#allocation2] sm:$0xff] %vm261, 0.0
          %vm263 = vcmask 102400
          %264 = vst.msk [vmem:[#allocation2 + $0x8] sm:$0x1f] %vm263, 0.0
          %v266 = vcombine.high %v254, %v254
          %vm268 = vcmask 1043456
          %v269 = vsel %vm268, %v254, 0.0
          %v270 = vsel %vm268, %v266, 0.0
          %v271 = vadd.f32 %v269, %v270
          %272 = vadd.xlane.f32.xlu0 %v271
          %v273 = vpop.xlane.xlu0 %272
          %v274 = vmul.f32 %v273, 0.00390625
          %vm275 = vcmask 3072
          %276 = vst.msk [vmem:[#allocation3] sm:$0xf] %vm275, %v274
        $region40: #{tpu_custom_call.1} parent=27 // pred_fallthru
          _
        %v277 = vld [vmem:[#allocation3] sm:$0xf]
        %279 = vset.pattern.permute.xlu0 0
        %280 = vperm.xlu0 %279, %v277
        %v281 = vpop.permute.xlu0 %280
        %v283 = vunpack.c.l.s4 839922192
        %v284 = vunpack.c.0.s8 %v283
        %v285 = vlaneseq
        %v286 = vshrl.u32 %v285, 7
        %v287 = vsub.s32 %v284, %v286
        %v288 = vrot.slane %v281, %v287
        %v290 = vsub.f32 %v254, %v288
        %v292 = vcombine.high %v290, %v290
        %v296 = vrot.slane %v255, 4
        %v297 = vrot.slane %v256, 4
        %vm300 = vcmask 1043456
        %v301 = vsel %vm300, %v290, %v296
        %v302 = vsel %vm300, %v292, %v297
        %v303 = vsel %vm300, %v296, 1.0
        %v304 = vsel %vm300, %v297, 1.0
        %v305 = vld [vmem:[#allocation2] sm:$0xff]
        %v306 = vld [vmem:[#allocation2 + $0x8] sm:$0x1f]
        %307 = vmatprep.subr.mxu0 %v302
        %308 = vmatpush1.xpose.msra.mxu0 %v301
        %309 = vmatprep.subr.mxu0 %v304
        %310 = vmatpush1.xpose.msra.mxu0 %v303
        %311 = vmatprep.subr.mxu0 0.0
        %312 = vmatpush1.xpose.msra.mxu0 0.0
        %313 = vmatprep.subr.mxu0 0.0
        %314 = vmatpush1.xpose.msra.mxu0 0.0
        %315 = vmatprep.subr.mxu0 0.0
        %316 = vmatpush1.xpose.msra.mxu0 0.0
        %317 = vmatprep.subr.mxu0 0.0
        %318 = vmatpush1.xpose.msra.mxu0 0.0
        %319 = vmatprep.subr.mxu0 0.0
        %320 = vmatpush1.xpose.msra.mxu0 0.0
        %321 = vmatprep.subr.mxu0 0.0
        %322 = vmatpush1.xpose.msra.mxu0 0.0
        %323 = vmatprep.subr.mxu0 0.0
        %324 = vmatpush1.xpose.msra.mxu0 0.0
        %325 = vmatprep.subr.mxu0 0.0
        %326 = vmatpush1.xpose.msra.mxu0 0.0
        %327 = vmatprep.subr.mxu0 0.0
        %328 = vmatpush1.xpose.msra.mxu0 0.0
        %329 = vmatprep.subr.mxu0 0.0
        %330 = vmatpush1.xpose.msra.mxu0 0.0
        %331 = vmatprep.subr.mxu0 0.0
        %332 = vmatpush1.xpose.msra.mxu0 0.0
        %333 = vmatprep.subr.mxu0 0.0
        %334 = vmatpush1.xpose.msra.mxu0 0.0
        %335 = vmatprep.subr.mxu0 0.0
        %336 = vmatpush1.xpose.msra.mxu0 0.0
        %337 = vmatprep.subr.mxu0 0.0
        %338 = vmatpush1.xpose.msra.mxu0 0.0
        %339 = vmatprep.subr.mxu0 0.0
        %340 = vmatpush1.xpose.msra.mxu0 0.0
        %341 = vmatprep.subr.mxu0 0.0
        %342 = vmatpush1.xpose.msra.mxu0 0.0
        %343 = vmatprep.subr.mxu0 0.0
        %344 = vmatpush1.xpose.msra.mxu0 0.0
        %345 = vmatprep.subr.mxu0 0.0
        %346 = vmatpush1.xpose.msra.mxu0 0.0
        %347 = vmatprep.subr.mxu0 0.0
        %348 = vmatpush1.xpose.msra.mxu0 0.0
        %349 = vmatprep.subr.mxu0 0.0
        %350 = vmatpush1.xpose.msra.mxu0 0.0
        %351 = vmatprep.subr.mxu0 0.0
        %352 = vmatpush1.xpose.msra.mxu0 0.0
        %353 = vmatprep.subr.mxu0 0.0
        %354 = vmatpush1.xpose.msra.mxu0 0.0
        %355 = vmatprep.subr.mxu0 0.0
        %356 = vmatpush1.xpose.msra.mxu0 0.0
        %357 = vmatprep.subr.mxu0 0.0
        %358 = vmatpush1.xpose.msra.mxu0 0.0
        %359 = vmatprep.subr.mxu0 0.0
        %360 = vmatpush1.xpose.msra.mxu0 0.0
        %361 = vmatprep.subr.mxu0 0.0
        %362 = vmatpush1.xpose.msra.mxu0 0.0
        %363 = vmatprep.subr.mxu0 0.0
        %364 = vmatpush1.xpose.msra.mxu0 0.0
        %365 = vmatprep.subr.mxu0 0.0
        %366 = vmatpush1.xpose.msra.mxu0 0.0
        %367 = vmatprep.subr.mxu0 0.0
        %368 = vmatpush1.xpose.msra.mxu0 0.0
        %369 = vmatprep.subr.mxu0 0.0
        %370 = vmatpush1.xpose.msra.mxu0 0.0
        %371 = vmatprep.mubr.f32.mxu0 %v302
        %372 = vmatmul.mubr.f32.gmra.mrb[0].mxu0 %v301
        %v373 = vpop.f32.mrb[0].mxu0
        %v374 = vadd.f32 0.0, %v373
        %v375 = vpop.f32.mrb[0].mxu0
        %376 = vmatprep.mubr.f32.mxu0 %v304
        %377 = vmatmul.mubr.f32.gmra.mrb[0].mxu0 %v303
        %v378 = vpop.f32.mrb[0].mxu0
        %v379 = vadd.f32 0.0, %v378
        %v380 = vpop.f32.mrb[0].mxu0
        %381 = vdwg.mxu0
        %v382 = vadd.f32 %v305, %v374
        %v383 = vadd.f32 %v306, %v379
        %vm384 = vcmask 105472
        %385 = vst.msk [vmem:[#allocation2] sm:$0xff] %vm384, %v382
        %vm386 = vcmask 102400
        %387 = vst.msk [vmem:[#allocation2 + $0x8] sm:$0x1f] %vm386, %v383
        // Predicated region
        $region41: #{tpu_custom_call.1} parent=27 // pred_check
          %p388 = pneg %p257
        $region42: #{tpu_custom_call.1} parent=27 // pred_check_branch
          %390 = sbr.rel (%p388) target = $region44
        $region43: #{tpu_custom_call.1} parent=27 // pred_region
          %v391 = vld [vmem:[#allocation2] sm:$0xff]
          %v392 = vld [vmem:[#allocation2 + $0x8] sm:$0x1f]
          %v393 = vlaneseq
          %v394 = vand.u32 %v393, 127
          %v395 = vlaneseq
          %v396 = vshrl.u32 %v395, 7
          %vm397 = vcmp.eq.s32.totalorder %v396, %v394
          %v398 = vsel %vm397, %v391, 0.0
          %vm399 = vcmask 27648
          %v400 = vsel %vm399, %v398, 0.0
          %401 = vadd.xlane.f32.xlu0 %v400
          %v402 = vpop.xlane.xlu0 %401
          %v403 = vrot.slane %v402, 4
          %v404 = vadd.f32 %v402, %v403
          %v405 = vrot.slane %v404, 2
          %v406 = vadd.f32 %v404, %v405
          %v407 = vrot.slane %v406, 1
          %v408 = vadd.f32 %v406, %v407
          %s409 = vtos %v408
          %v410 = vadd.f32 %v392, 1e-08
          %v411 = vlaneseq
          %v412 = vshrl.u32 %v411, 7
          %v413 = vsub.s32 4, %v412
          %v414 = vrot.slane %v410, %v413
          %v415 = vrcp.pop %v414
          %v416 = vmul.f32 %v391, %v415
          %418 = vrot.lane.b32.xlu0 %v416, 124
          %v419 = vpop.permute.xlu0 %418
          %v422 = vrot.slane %v391, 4
          %v423 = vrot.slane %v392, 4
          %v424 = vsel %vm300, %v422, %v423
          %425 = vrot.lane.b32.xlu0 %v424, 124
          %v426 = vpop.permute.xlu0 %425
          %vm428 = vcmask 64512
          %v429 = vsel %vm428, %v419, 0
          %431 = vmatprep.subr.mxu0 0.0
          %432 = vmatpush1.msra.mxu0 %v426
          %433 = vmatprep.subr.mxu0 0.0
          %434 = vmatpush1.msra.mxu0 0.0
          %435 = vmatprep.subr.mxu0 0.0
          %436 = vmatpush1.msra.mxu0 0.0
          %437 = vmatprep.subr.mxu0 0.0
          %438 = vmatpush1.msra.mxu0 0.0
          %439 = vmatprep.subr.mxu0 0.0
          %440 = vmatpush1.msra.mxu0 0.0
          %441 = vmatprep.subr.mxu0 0.0
          %442 = vmatpush1.msra.mxu0 0.0
          %443 = vmatprep.subr.mxu0 0.0
          %444 = vmatpush1.msra.mxu0 0.0
          %445 = vmatprep.subr.mxu0 0.0
          %446 = vmatpush1.msra.mxu0 0.0
          %447 = vmatprep.subr.mxu0 0.0
          %448 = vmatpush1.msra.mxu0 0.0
          %449 = vmatprep.subr.mxu0 0.0
          %450 = vmatpush1.msra.mxu0 0.0
          %451 = vmatprep.subr.mxu0 0.0
          %452 = vmatpush1.msra.mxu0 0.0
          %453 = vmatprep.subr.mxu0 0.0
          %454 = vmatpush1.msra.mxu0 0.0
          %455 = vmatprep.subr.mxu0 0.0
          %456 = vmatpush1.msra.mxu0 0.0
          %457 = vmatprep.subr.mxu0 0.0
          %458 = vmatpush1.msra.mxu0 0.0
          %459 = vmatprep.subr.mxu0 0.0
          %460 = vmatpush1.msra.mxu0 0.0
          %461 = vmatprep.subr.mxu0 0.0
          %462 = vmatpush1.msra.mxu0 0.0
          %463 = vmatprep.subr.mxu0 0.0
          %464 = vmatpush1.msra.mxu0 0.0
          %465 = vmatprep.subr.mxu0 0.0
          %466 = vmatpush1.msra.mxu0 0.0
          %467 = vmatprep.subr.mxu0 0.0
          %468 = vmatpush1.msra.mxu0 0.0
          %469 = vmatprep.subr.mxu0 0.0
          %470 = vmatpush1.msra.mxu0 0.0
          %471 = vmatprep.subr.mxu0 0.0
          %472 = vmatpush1.msra.mxu0 0.0
          %473 = vmatprep.subr.mxu0 0.0
          %474 = vmatpush1.msra.mxu0 0.0
          %475 = vmatprep.subr.mxu0 0.0
          %476 = vmatpush1.msra.mxu0 0.0
          %477 = vmatprep.subr.mxu0 0.0
          %478 = vmatpush1.msra.mxu0 0.0
          %479 = vmatprep.subr.mxu0 0.0
          %480 = vmatpush1.msra.mxu0 0.0
          %481 = vmatprep.subr.mxu0 0.0
          %482 = vmatpush1.msra.mxu0 0.0
          %483 = vmatprep.subr.mxu0 0.0
          %484 = vmatpush1.msra.mxu0 0.0
          %485 = vmatprep.subr.mxu0 0.0
          %486 = vmatpush1.msra.mxu0 0.0
          %487 = vmatprep.subr.mxu0 0.0
          %488 = vmatpush1.msra.mxu0 0.0
          %489 = vmatprep.subr.mxu0 0.0
          %490 = vmatpush1.msra.mxu0 0.0
          %491 = vmatprep.subr.mxu0 0.0
          %492 = vmatpush1.msra.mxu0 0.0
          %493 = vmatprep.subr.mxu0 0.0
          %494 = vmatpush1.msra.mxu0 0.0
          %495 = vmatprep.mubr.f32.mxu0 0.0
          %496 = vmatmul.mubr.f32.gmra.mrb[0].mxu0 %v429
          %v497 = vpop.f32.mrb[0].mxu0
          %v498 = vadd.f32 0.0, %v497
          %v499 = vpop.f32.mrb[0].mxu0
          %500 = vdwg.mxu0
          %v501 = vmul.f32 %v416, %v391
          %503 = vrot.lane.b32.xlu0 %v501, 124
          %v504 = vpop.permute.xlu0 %503
          %vm506 = vcmask 60416
          %v507 = vsel %vm506, %v504, 0.0
          %508 = vadd.xlane.f32.xlu0 %v507
          %v509 = vpop.xlane.xlu0 %508
          %v510 = vrot.slane %v509, 4
          %v511 = vadd.f32 %v509, %v510
          %v512 = vrot.slane %v511, 2
          %v513 = vadd.f32 %v511, %v512
          %v514 = vrot.slane %v513, 1
          %v515 = vadd.f32 %v513, %v514
          %s516 = vtos %v515
          %s517 = smul.f32 %s516, 2.0
          %s518 = ssub.f32 %s409, %s517
          %v520 = vmul.f32 %v498, %v419
          %v521 = vsel %vm506, %v520, 0.0
          %522 = vadd.xlane.f32.xlu0 %v521
          %v523 = vpop.xlane.xlu0 %522
          %v524 = vrot.slane %v523, 4
          %v525 = vadd.f32 %v523, %v524
          %v526 = vrot.slane %v525, 2
          %v527 = vadd.f32 %v525, %v526
          %v528 = vrot.slane %v527, 1
          %v529 = vadd.f32 %v527, %v528
          %s530 = vtos %v529
          %s531 = sadd.f32 %s518, %s530
          %v532 = vld [vmem:[#allocation3] sm:$0xf]
          %v533 = vrcp.pop %v410
          %v534 = vmul.f32 %v392, %v533
          %v535 = vadd.f32 %v391, 1e-08
          %v536 = vrcp.pop %v535
          %v537 = vmul.f32 %v391, %v536
          %v538 = vlaneseq
          %v539 = vshrl.u32 %v538, 7
          %v540 = vsub.s32 4, %v539
          %v541 = vrot.slane %v392, %v540
          %v542 = vmul.f32 %v416, %v541
          %544 = vrot.lane.b32.xlu0 %v542, 124
          %v545 = vpop.permute.xlu0 %544
          %v547 = vsel %vm506, %v545, 0.0
          %548 = vadd.xlane.f32.xlu0 %v547
          %v549 = vpop.xlane.xlu0 %548
          %v550 = vsub.f32 %v391, %v549
          %v551 = vlaneseq
          %v552 = vshrl.u32 %v551, 7
          %v553 = vsub.s32 4, %v552
          %v554 = vrot.slane %v534, %v553
          %v555 = vmul.f32 %v391, %v554
          %557 = vrot.lane.b32.xlu0 %v555, 124
          %v558 = vpop.permute.xlu0 %557
          %v560 = vsel %vm506, %v558, 0.0
          %561 = vadd.xlane.f32.xlu0 %v560
          %v562 = vpop.xlane.xlu0 %561
          %v563 = vsub.f32 %v550, %v562
          %565 = vrot.lane.b32.xlu0 %v554, 124
          %v566 = vpop.permute.xlu0 %565
          %v568 = vmul.f32 %v498, %v566
          %v569 = vsel %vm506, %v568, 0.0
          %570 = vadd.xlane.f32.xlu0 %v569
          %v571 = vpop.xlane.xlu0 %570
          %v572 = vadd.f32 %v563, %v571
          %v573 = vmul.f32 %v534, %v392
          %v575 = vrot.slane %v573, 4
          %576 = vrot.lane.b32.xlu0 %v575, 124
          %v577 = vpop.permute.xlu0 %576
          %vm579 = vcmask 57344
          %v580 = vsel %vm579, %v577, 0.0
          %581 = vadd.xlane.f32.xlu0 %v580
          %v582 = vpop.xlane.xlu0 %581
          %v583 = vrot.slane %v582, 4
          %v584 = vadd.f32 %v582, %v583
          %v585 = vrot.slane %v584, 2
          %v586 = vadd.f32 %v584, %v585
          %v587 = vrot.slane %v586, 1
          %v588 = vadd.f32 %v586, %v587
          %s589 = vtos %v588
          %591 = vset.pattern.permute.xlu0 12
          %592 = vperm.xlu0 %591, %v537
          %v593 = vpop.permute.xlu0 %592
          %596 = vset.pattern.permute.xlu0 12
          %597 = vperm.xlu0 %596, %v534
          %v598 = vpop.permute.xlu0 %597
          %v600 = vmul.f32 %v391, %v593
          %v601 = vmul.f32 %v392, %v598
          %v602 = vmul.f32 %v600, %v554
          %v603 = vmul.f32 %v601, %v554
          %v606 = vrot.slane %v602, 4
          %v607 = vrot.slane %v603, 4
          %v608 = vsel %vm300, %v606, %v607
          %609 = vrot.lane.b32.xlu0 %v608, 124
          %v610 = vpop.permute.xlu0 %609
          %v612 = vsel %vm428, %v610, 0.0
          %613 = vadd.xlane.f32.xlu0 %v612
          %v614 = vpop.xlane.xlu0 %613
          %v615 = vrot.slane %v614, 4
          %v616 = vadd.f32 %v614, %v615
          %v617 = vrot.slane %v616, 2
          %v618 = vadd.f32 %v616, %v617
          %v619 = vrot.slane %v618, 1
          %v620 = vadd.f32 %v618, %v619
          %s621 = vtos %v620
          %s622 = smul.f32 %s589, 2.0
          %s623 = ssub.f32 256.0, %s622
          %s624 = sadd.f32 %s623, %s621
          %626 = vrot.lane.b32.xlu0 %v572, 116
          %v627 = vpop.permute.xlu0 %626
          %v629 = vmul.f32 %v532, %v627
          %vm630 = vcmask 3072
          %v631 = vsel %vm630, %v629, 0.0
          %632 = vadd.xlane.f32.xlu0 %v631
          %v633 = vpop.xlane.xlu0 %632
          %v634 = vrot.slane %v633, 4
          %v635 = vadd.f32 %v633, %v634
          %v636 = vrot.slane %v635, 2
          %v637 = vadd.f32 %v635, %v636
          %v638 = vrot.slane %v637, 1
          %v639 = vadd.f32 %v637, %v638
          %s640 = vtos %v639
          %s641 = smul.f32 %s640, 2.0
          %s642 = sadd.f32 %s531, %s641
          %v643 = vmul.f32 %v532, %v532
          %v644 = vsel %vm630, %v643, 0.0
          %645 = vadd.xlane.f32.xlu0 %v644
          %v646 = vpop.xlane.xlu0 %645
          %v647 = vrot.slane %v646, 4
          %v648 = vadd.f32 %v646, %v647
          %v649 = vrot.slane %v648, 2
          %v650 = vadd.f32 %v648, %v649
          %v651 = vrot.slane %v650, 1
          %v652 = vadd.f32 %v650, %v651
          %s653 = vtos %v652
          %s654 = smul.f32 %s653, %s624
          %s655 = sadd.f32 %s642, %s654
          %656 = vrot.lane.b32.xlu0 %v391, 116
          %v657 = vpop.permute.xlu0 %656
          %v659 = vsel %vm630, %v657, 0.0
          %660 = vadd.xlane.f32.xlu0 %v659
          %v661 = vpop.xlane.xlu0 %660
          %v662 = vrot.slane %v661, 4
          %v663 = vadd.f32 %v661, %v662
          %v664 = vrot.slane %v663, 2
          %v665 = vadd.f32 %v663, %v664
          %v666 = vrot.slane %v665, 1
          %v667 = vadd.f32 %v665, %v666
          %s668 = vtos %v667
          %v669 = vsel %vm630, %v532, 0.0
          %670 = vadd.xlane.f32.xlu0 %v669
          %v671 = vpop.xlane.xlu0 %670
          %v672 = vrot.slane %v671, 4
          %v673 = vadd.f32 %v671, %v672
          %v674 = vrot.slane %v673, 2
          %v675 = vadd.f32 %v673, %v674
          %v676 = vrot.slane %v675, 1
          %v677 = vadd.f32 %v675, %v676
          %s678 = vtos %v677
          %s679 = smul.f32 %s678, 256.0
          %s680 = sadd.f32 %s668, %s679
          %s681 = smul.f32 %s680, 0.0009765625
          %v682 = vstv %s681
          %v683 = vsub.f32 %v532, %v682
          %v684 = vmul.f32 %v683, %v657
          %v685 = vsel %vm630, %v684, 0.0
          %686 = vadd.xlane.f32.xlu0 %v685
          %v687 = vpop.xlane.xlu0 %686
          %v688 = vrot.slane %v687, 4
          %v689 = vadd.f32 %v687, %v688
          %v690 = vrot.slane %v689, 2
          %v691 = vadd.f32 %v689, %v690
          %v692 = vrot.slane %v691, 1
          %v693 = vadd.f32 %v691, %v692
          %s694 = vtos %v693
          %s695 = smul.f32 %s694, 2.0
          %s696 = sadd.f32 %s409, %s695
          %v697 = vmul.f32 %v683, %v683
          %v698 = vsel %vm630, %v697, 0.0
          %699 = vadd.xlane.f32.xlu0 %v698
          %v700 = vpop.xlane.xlu0 %699
          %v701 = vrot.slane %v700, 4
          %v702 = vadd.f32 %v700, %v701
          %v703 = vrot.slane %v702, 2
          %v704 = vadd.f32 %v702, %v703
          %v705 = vrot.slane %v704, 1
          %v706 = vadd.f32 %v704, %v705
          %s707 = vtos %v706
          %s708 = smul.f32 %s707, 256.0
          %s709 = sadd.f32 %s696, %s708
          %vm710 = vcmp.eq.s32.totalorder %v394, 0
          %v711 = vstv %s655
          %v712 = vsel %vm710, %v711, 0.0
          %v713 = vstv %s709
          %v714 = vsel %vm710, %v713, 0.0
          %vm715 = vcmask 0
          %716 = vst.msk [vmem:[%s250] sm:$0x1] %vm715, %v712
          %717 = vst.msk [vmem:[%s253] sm:$0x1] %vm715, %v714
        $region44: #{tpu_custom_call.1} parent=27 // pred_fallthru
          _
        %p718 = scmp.lt.s32.totalorder %s25, 1
        %s719 = scalar_select %p718, %s25, 1
        %s720 = scalar_lea.vmem %s2, %s719
        %p721 = scmp.lt.s32.totalorder %s25, 1
        %s722 = scalar_select %p721, %s25, 1
        %s723 = scalar_lea.vmem %s3, %s722
        // Predicated region
        $region45: #{tpu_custom_call.1} parent=27 // pred_check
          %p724 = pneg %p107
        $region46: #{tpu_custom_call.1} parent=27 // pred_check_branch
          %726 = sbr.rel (%p724) target = $region48
        $region47: #{tpu_custom_call.1} parent=27 // pred_region
          _
        $region48: #{tpu_custom_call.1} parent=27 // pred_fallthru
          _
        // Predicated region
        $region49: #{tpu_custom_call.1} parent=27 // pred_check
          %p727 = pneg %p133
        $region50: #{tpu_custom_call.1} parent=27 // pred_check_branch
          %729 = sbr.rel (%p727) target = $region52
        $region51: #{tpu_custom_call.1} parent=27 // pred_region
          _
        $region52: #{tpu_custom_call.1} parent=27 // pred_fallthru
          _
      $region28: #{tpu_custom_call.1} parent=5 // pred_fallthru
        _
      %p730 = scmp.le.s32.totalorder 2, %s16
      // Predicated region
      $region53: #{tpu_custom_call.1} parent=5 // pred_check
        %p731 = pneg %p730
      $region54: #{tpu_custom_call.1} parent=5 // pred_check_branch
        %733 = sbr.rel (%p731) target = $region56
      $region55: #{tpu_custom_call.1} parent=5 // pred_region
        %s734 = ssub.s32 %s16, 2
        // Predicated region
        $region57: #{tpu_custom_call.1} parent=55 // pred_check
          %p735 = pneg %p113
        $region58: #{tpu_custom_call.1} parent=55 // pred_check_branch
          %737 = sbr.rel (%p735) target = $region60
        $region59: #{tpu_custom_call.1} parent=55 // pred_region
          %p738 = scmp.lt.s32.totalorder %s27, 1
          %s739 = scalar_select %p738, %s27, 1
          %s740 = scalar_lea.vmem %s2, %s739
        $region60: #{tpu_custom_call.1} parent=55 // pred_fallthru
          _
        // Predicated region
        $region61: #{tpu_custom_call.1} parent=55 // pred_check
          %p741 = pneg %p139
        $region62: #{tpu_custom_call.1} parent=55 // pred_check_branch
          %743 = sbr.rel (%p741) target = $region64
        $region63: #{tpu_custom_call.1} parent=55 // pred_region
          %p744 = scmp.lt.s32.totalorder %s27, 1
          %s745 = scalar_select %p744, %s27, 1
          %s746 = scalar_lea.vmem %s3, %s745
        $region64: #{tpu_custom_call.1} parent=55 // pred_fallthru
          _
      $region56: #{tpu_custom_call.1} parent=5 // pred_fallthru
        _
    $region6: #{tpu_custom_call.1} parent=1 // loop_footer
      %s20 = sadd.s32 1, %s16
    $region7: #{tpu_custom_call.1} parent=1 // loop_footer_branch
      %15 = sbr.rel target = $region3
    $region8: #{tpu_custom_call.1} parent=1 // loop_exit
      _
    %747 = vsyncpa [#allocation5], 1
    %s748 = scalar_lea.sflag [#allocation5], 1
    %749 = vsyncpa %s748, 1
    %750 = vsyncpa [#allocation7], 1
    %s751 = scalar_lea.sflag [#allocation7], 1
    %752 = vsyncpa %s751, 1

</llo_original>
